<compile_context>
chip_gen: v6e
topology: v6e:2x2x1
jax: 0.10.0
libtpu: 0.0.40
codegen_flags: <defaults>
</compile_context>

<pallas_src>
import jax
import jax.numpy as jnp
from jax.experimental import pallas as pl
from jax.experimental.pallas import tpu as pltpu


def mm_fused_kernel(x_ref, bw_ref, brow_ref, sel_ref, pool_ref,
                    fcw_ref, fcb_ref, w1_ref, b1_ref, zsel_ref, w2p_ref,
                    b2p_ref, out_ref):
    # ---- conv3x3 (SAME) for the whole batch as ONE matmul -----------------
    # x_ref: (N*H, 3*(W+2)*C) bf16, bw_ref: (3*(W+2)*C, W*Cout) bf16
    acc = jnp.dot(x_ref[...], bw_ref[...],
                  preferred_element_type=jnp.float32)            # (N*H, W*Cout)
    r = jnp.maximum(acc + brow_ref[...], 0.0)                     # bias + ReLU

    # ---- global average pool: per-image row-sum, then channel fold --------
    rowsum = jnp.dot(sel_ref[...], r,
                     preferred_element_type=jnp.float32)          # (N, W*Cout)
    pooled = jnp.dot(rowsum, pool_ref[...],
                     preferred_element_type=jnp.float32)          # (N, Cout)

    # ---- Encoder fc -> normalise -> HumanModel MLP (all f32) --------------
    z = jnp.dot(pooled, fcw_ref[...],
                preferred_element_type=jnp.float32) + fcb_ref[...]   # (N, 2)
    zmin = jnp.min(z, axis=0, keepdims=True)
    zmax = jnp.max(z, axis=0, keepdims=True)
    den = zmax - zmin
    zn = jnp.where(den > 0.0, (z - zmin) / den, jnp.zeros_like(z))

    hh = jnp.maximum(
        jnp.dot(zn, w1_ref[...], preferred_element_type=jnp.float32)
        + b1_ref[...], 0.0)                                          # (N, hidden)

    # ---- single lane-dense output slab: z -> cols 0:2, y -> cols 2:2+nc ---
    out_ref[...] = (jnp.dot(zn, zsel_ref[...], preferred_element_type=jnp.float32)
                    + jnp.dot(hh, w2p_ref[...], preferred_element_type=jnp.float32)
                    + b2p_ref[...])


def mmmodel_forward(x, conv_w, conv_b, fc_w, fc_b, w1, b1, w2, b2):
    n, cin, himg, wimg = x.shape
    cout = conv_w.shape[0]
    hidden = w1.shape[1]
    nc = w2.shape[1]
    wp = wimg + 2
    out_w = 128                       # lane-dense output slab width

    f32 = jnp.float32
    # PyTorch-style 1-D biases -> (1, dim) rows for in-kernel broadcasting.
    conv_b2 = conv_b.reshape(1, cout).astype(f32)
    fc_b2 = fc_b.reshape(1, -1).astype(f32)
    b1_2 = b1.reshape(1, -1).astype(f32)
    b2_2 = b2.reshape(1, -1).astype(f32)

    # ---- glue (plain JAX): pure layout prep, no heavy compute -------------
    # NCHW -> NHWC, SAME-pad, flatten (W, C) onto the lane axis, then stack
    # the 3 dh row-shifted views so the conv is a single matmul.
    xh = jnp.transpose(x, (0, 2, 3, 1)).astype(f32)
    xp = jnp.pad(xh, ((0, 0), (1, 1), (1, 1), (0, 0))).reshape(n, himg + 2, wp * cin)
    x_slab = jnp.concatenate([xp[:, dh:dh + himg] for dh in range(3)], axis=-1)
    x_slab = x_slab.reshape(n * himg, 3 * wp * cin).astype(jnp.bfloat16)

    # Banded conv weight over the padded lane axis:
    #   bw[dh*(W+2)*C + win*C + c, wout*Cout + f] = conv_w[f, c, dh, win - wout]
    shift = (jnp.arange(wp)[None, :, None]
             == (jnp.arange(wimg)[:, None, None] + jnp.arange(3)[None, None, :])
             ).astype(f32)                                          # (W, Wp, 3)
    wk = jnp.transpose(conv_w, (2, 3, 1, 0)).astype(f32)            # (dh, dw, C, Cout)
    bw = jnp.einsum('ovd,hdcf->hvcof', shift, wk)
    bw = bw.reshape(3 * wp * cin, wimg * cout).astype(jnp.bfloat16)  # (216, 128)

    brow = jnp.tile(conv_b2, (1, wimg))                              # (1, W*Cout)

    # Per-image row-sum selector and channel-folding pool matrix (mean H*W).
    sel = (jnp.arange(n)[:, None]
           == (jnp.arange(n * himg)[None, :] // himg)).astype(f32)   # (N, N*H)
    pool_mat = jnp.tile(jnp.eye(cout, dtype=f32), (wimg, 1)) / float(himg * wimg)

    # Lane-dense output slab packing: z -> cols [0,2), y -> cols [2, 2+nc).
    z_sel = jnp.zeros((2, out_w), f32).at[0, 0].set(1.0).at[1, 1].set(1.0)
    w2p = jnp.zeros((hidden, out_w), f32).at[:, 2:2 + nc].set(w2.astype(f32))
    b2p = jnp.zeros((1, out_w), f32).at[:, 2:2 + nc].set(b2_2[0])

    out = pl.pallas_call(
        mm_fused_kernel,
        out_shape=jax.ShapeDtypeStruct((n, out_w), f32),
        grid_spec=pltpu.PrefetchScalarGridSpec(
            num_scalar_prefetch=0,
            grid=(1,),                    # whole batch in one step (<1 MiB VMEM)
            in_specs=[
                pl.BlockSpec((n * himg, 3 * wp * cin), lambda i: (0, 0)),   # x slab
                pl.BlockSpec((3 * wp * cin, wimg * cout), lambda i: (0, 0)),# conv weight
                pl.BlockSpec((1, wimg * cout), lambda i: (0, 0)),           # conv bias row
                pl.BlockSpec((n, n * himg), lambda i: (0, 0)),              # row-sum selector
                pl.BlockSpec((wimg * cout, cout), lambda i: (0, 0)),        # pool matrix
                pl.BlockSpec((cout, 2), lambda i: (0, 0)),                  # fc_w
                pl.BlockSpec((1, 2), lambda i: (0, 0)),                     # fc_b
                pl.BlockSpec((2, hidden), lambda i: (0, 0)),                # w1
                pl.BlockSpec((1, hidden), lambda i: (0, 0)),                # b1
                pl.BlockSpec((2, out_w), lambda i: (0, 0)),                 # z column selector
                pl.BlockSpec((hidden, out_w), lambda i: (0, 0)),            # w2 (padded)
                pl.BlockSpec((1, out_w), lambda i: (0, 0)),                 # b2 (padded)
            ],
            out_specs=pl.BlockSpec((n, out_w), lambda i: (0, 0)),
            scratch_shapes=[],
        ),
        compiler_params=pltpu.CompilerParams(
            dimension_semantics=("arbitrary",)),
    )(x_slab, bw, brow, sel, pool_mat,
      fc_w.astype(f32), fc_b2, w1.astype(f32), b1_2, z_sel, w2p, b2p)

    return out[:, 0:2], out[:, 2:2 + nc]


def _ref_forward(x, conv_w, conv_b, fc_w, fc_b, w1, b1, w2, b2):
    hp = jax.lax.Precision.HIGHEST
    feat = jax.lax.conv_general_dilated(
        x, conv_w, window_strides=(1, 1), padding='SAME',
        dimension_numbers=('NCHW', 'OIHW', 'NCHW'), precision=hp)
    feat = jnp.maximum(feat + conv_b[None, :, None, None], 0.0)
    pooled = jnp.mean(feat, axis=(2, 3))
    z = jnp.dot(pooled, fc_w, precision=hp) + fc_b
    zmin = jnp.min(z, axis=0, keepdims=True)
    zmax = jnp.max(z, axis=0, keepdims=True)
    zn = (z - zmin) / (zmax - zmin)
    h = jnp.maximum(jnp.dot(zn, w1, precision=hp) + b1, 0.0)
    y = jnp.dot(h, w2, precision=hp) + b2
    return zn, y


if __name__ == "__main__":
    key = jax.random.PRNGKey(0)
    kx, kc, kcb, kf, kfb, k1, k1b, k2, k2b = jax.random.split(key, 9)

    N, C, H, W = 8, 4, 16, 16
    Cout, hidden, num_classes = 8, 100, 10

    x = jax.random.normal(kx, (N, C, H, W), jnp.float32)
    # give each image a different scale so batch min/max normalisation is
    # numerically well-conditioned for the reference comparison
    x = x * (0.5 + jnp.arange(N, dtype=jnp.float32)[:, None, None, None])
    conv_w = 0.1 * jax.random.normal(kc, (Cout, C, 3, 3), jnp.float32)
    conv_b = 0.1 * jax.random.normal(kcb, (Cout,), jnp.float32)       # 1-D, PyTorch style
    fc_w = 0.1 * jax.random.normal(kf, (Cout, 2), jnp.float32)
    fc_b = 0.1 * jax.random.normal(kfb, (2,), jnp.float32)
    w1 = 0.1 * jax.random.normal(k1, (2, hidden), jnp.float32)
    b1 = 0.1 * jax.random.normal(k1b, (hidden,), jnp.float32)
    w2 = 0.1 * jax.random.normal(k2, (hidden, num_classes), jnp.float32)
    b2 = 0.1 * jax.random.normal(k2b, (num_classes,), jnp.float32)

    z, y = jax.jit(mmmodel_forward)(x, conv_w, conv_b, fc_w, fc_b, w1, b1, w2, b2)
    jax.block_until_ready((z, y))

    zr, yr = _ref_forward(x, conv_w, conv_b, fc_w, fc_b, w1, b1, w2, b2)

    assert z.shape == (N, 2) and y.shape == (N, num_classes)
    assert bool(jnp.isfinite(z).all()) and bool(jnp.isfinite(y).all())
    # normalise() guarantees each coordinate column spans exactly [0, 1]
    assert float(jnp.max(jnp.abs(jnp.min(z, axis=0)))) < 1e-5
    assert float(jnp.max(jnp.abs(jnp.max(z, axis=0) - 1.0))) < 1e-5
    # match a pure-JAX/XLA reference of the same forward pass
    assert bool(jnp.allclose(z, zr, atol=2e-2, rtol=2e-2))
    assert bool(jnp.allclose(y, yr, atol=2e-2, rtol=2e-2))
    print("KERNEL_OK")
</pallas_src>

<mosaic_0001>
module attributes {stable_mosaic.version = 11 : i64} {
  func.func @mm_fused_kernel(%arg0: i32, %arg1: memref<128x216xbf16, #tpu.memory_space<vmem>>, %arg2: memref<216x128xbf16, #tpu.memory_space<vmem>>, %arg3: memref<1x128xf32, #tpu.memory_space<vmem>>, %arg4: memref<8x128xf32, #tpu.memory_space<vmem>>, %arg5: memref<128x8xf32, #tpu.memory_space<vmem>>, %arg6: memref<8x2xf32, #tpu.memory_space<vmem>>, %arg7: memref<1x2xf32, #tpu.memory_space<vmem>>, %arg8: memref<2x100xf32, #tpu.memory_space<vmem>>, %arg9: memref<1x100xf32, #tpu.memory_space<vmem>>, %arg10: memref<2x128xf32, #tpu.memory_space<vmem>>, %arg11: memref<100x128xf32, #tpu.memory_space<vmem>>, %arg12: memref<1x128xf32, #tpu.memory_space<vmem>>, %arg13: memref<8x128xf32, #tpu.memory_space<vmem>>) attributes {dimension_semantics = [#tpu.dimension_semantics<arbitrary>], iteration_bounds = array<i64: 1>, scalar_prefetch = 0 : i64, scratch_operands = 0 : i64, tpu.core_type = #tpu.core_type<tc>, window_params = [{pipeline_mode = #tpu.pipeline_mode<synchronous>, transform_indices = @transform_0, window_bounds = array<i64: 128, 216>}, {pipeline_mode = #tpu.pipeline_mode<synchronous>, transform_indices = @transform_1, window_bounds = array<i64: 216, 128>}, {pipeline_mode = #tpu.pipeline_mode<synchronous>, transform_indices = @transform_2, window_bounds = array<i64: 1, 128>}, {pipeline_mode = #tpu.pipeline_mode<synchronous>, transform_indices = @transform_3, window_bounds = array<i64: 8, 128>}, {pipeline_mode = #tpu.pipeline_mode<synchronous>, transform_indices = @transform_4, window_bounds = array<i64: 128, 8>}, {pipeline_mode = #tpu.pipeline_mode<synchronous>, transform_indices = @transform_5, window_bounds = array<i64: 8, 2>}, {pipeline_mode = #tpu.pipeline_mode<synchronous>, transform_indices = @transform_6, window_bounds = array<i64: 1, 2>}, {pipeline_mode = #tpu.pipeline_mode<synchronous>, transform_indices = @transform_7, window_bounds = array<i64: 2, 100>}, {pipeline_mode = #tpu.pipeline_mode<synchronous>, transform_indices = @transform_8, window_bounds = array<i64: 1, 100>}, {pipeline_mode = #tpu.pipeline_mode<synchronous>, transform_indices = @transform_9, window_bounds = array<i64: 2, 128>}, {pipeline_mode = #tpu.pipeline_mode<synchronous>, transform_indices = @transform_10, window_bounds = array<i64: 100, 128>}, {pipeline_mode = #tpu.pipeline_mode<synchronous>, transform_indices = @transform_11, window_bounds = array<i64: 1, 128>}, {pipeline_mode = #tpu.pipeline_mode<synchronous>, transform_indices = @transform_12, window_bounds = array<i64: 8, 128>}]} {
    %c0 = arith.constant 0 : index
    %c0_0 = arith.constant 0 : index
    %0 = vector.load %arg1[%c0, %c0_0] : memref<128x216xbf16, #tpu.memory_space<vmem>>, vector<128x216xbf16>
    %c0_1 = arith.constant 0 : index
    %c0_2 = arith.constant 0 : index
    %1 = vector.load %arg2[%c0_1, %c0_2] : memref<216x128xbf16, #tpu.memory_space<vmem>>, vector<216x128xbf16>
    %cst = arith.constant dense<0.000000e+00> : vector<128x128xf32>
    %2 = tpu.matmul %0, %1, %cst {dimension_numbers = #tpu.dot_dimension_numbers<[1], [0], [0], [1], [0, 0, 1, 1], [], []>} : vector<128x216xbf16>, vector<216x128xbf16>, vector<128x128xf32> -> vector<128x128xf32>
    %c0_3 = arith.constant 0 : index
    %c0_4 = arith.constant 0 : index
    %3 = vector.load %arg3[%c0_3, %c0_4] : memref<1x128xf32, #tpu.memory_space<vmem>>, vector<1x128xf32>
    %4 = vector.broadcast %3 : vector<1x128xf32> to vector<128x128xf32>
    %5 = arith.addf %2, %4 : vector<128x128xf32>
    %cst_5 = arith.constant 0.000000e+00 : f32
    %6 = vector.broadcast %cst_5 : f32 to vector<128x128xf32>
    %7 = arith.maximumf %5, %6 : vector<128x128xf32>
    %c0_6 = arith.constant 0 : index
    %c0_7 = arith.constant 0 : index
    %8 = vector.load %arg4[%c0_6, %c0_7] : memref<8x128xf32, #tpu.memory_space<vmem>>, vector<8x128xf32>
    %cst_8 = arith.constant dense<0.000000e+00> : vector<8x128xf32>
    %9 = tpu.matmul %8, %7, %cst_8 {dimension_numbers = #tpu.dot_dimension_numbers<[1], [0], [0], [1], [0, 0, 1, 1], [], []>} : vector<8x128xf32>, vector<128x128xf32>, vector<8x128xf32> -> vector<8x128xf32>
    %c0_9 = arith.constant 0 : index
    %c0_10 = arith.constant 0 : index
    %10 = vector.load %arg5[%c0_9, %c0_10] : memref<128x8xf32, #tpu.memory_space<vmem>>, vector<128x8xf32>
    %cst_11 = arith.constant dense<0.000000e+00> : vector<8x8xf32>
    %11 = tpu.matmul %9, %10, %cst_11 {dimension_numbers = #tpu.dot_dimension_numbers<[1], [0], [0], [1], [0, 0, 1, 1], [], []>} : vector<8x128xf32>, vector<128x8xf32>, vector<8x8xf32> -> vector<8x8xf32>
    %c0_12 = arith.constant 0 : index
    %c0_13 = arith.constant 0 : index
    %12 = vector.load %arg6[%c0_12, %c0_13] : memref<8x2xf32, #tpu.memory_space<vmem>>, vector<8x2xf32>
    %cst_14 = arith.constant dense<0.000000e+00> : vector<8x2xf32>
    %13 = tpu.matmul %11, %12, %cst_14 {dimension_numbers = #tpu.dot_dimension_numbers<[1], [0], [0], [1], [0, 0, 1, 1], [], []>} : vector<8x8xf32>, vector<8x2xf32>, vector<8x2xf32> -> vector<8x2xf32>
    %c0_15 = arith.constant 0 : index
    %c0_16 = arith.constant 0 : index
    %14 = vector.load %arg7[%c0_15, %c0_16] : memref<1x2xf32, #tpu.memory_space<vmem>>, vector<1x2xf32>
    %15 = vector.broadcast %14 : vector<1x2xf32> to vector<8x2xf32>
    %16 = arith.addf %13, %15 : vector<8x2xf32>
    %cst_17 = arith.constant dense<0x7F800000> : vector<2xf32>
    %17 = vector.multi_reduction <minimumf>, %16, %cst_17 [0] : vector<8x2xf32> to vector<2xf32>
    %18 = vector.shape_cast %17 : vector<2xf32> to vector<1x2xf32>
    %cst_18 = arith.constant dense<0xFF800000> : vector<2xf32>
    %19 = vector.multi_reduction <maximumf>, %16, %cst_18 [0] : vector<8x2xf32> to vector<2xf32>
    %20 = vector.shape_cast %19 : vector<2xf32> to vector<1x2xf32>
    %21 = arith.subf %20, %18 : vector<1x2xf32>
    %cst_19 = arith.constant 0.000000e+00 : f32
    %22 = vector.broadcast %cst_19 : f32 to vector<1x2xf32>
    %23 = arith.cmpf ogt, %21, %22 : vector<1x2xf32>
    %24 = vector.broadcast %18 : vector<1x2xf32> to vector<8x2xf32>
    %25 = arith.subf %16, %24 : vector<8x2xf32>
    %26 = vector.broadcast %21 : vector<1x2xf32> to vector<8x2xf32>
    %27 = arith.divf %25, %26 : vector<8x2xf32>
    %cst_20 = arith.constant 0.000000e+00 : f32
    %28 = vector.broadcast %cst_20 : f32 to vector<8x2xf32>
    %29 = vector.shape_cast %23 : vector<1x2xi1> to vector<1x2xi1>
    %30 = vector.broadcast %29 : vector<1x2xi1> to vector<8x2xi1>
    %31 = arith.select %30, %27, %28 : vector<8x2xi1>, vector<8x2xf32>
    %c0_21 = arith.constant 0 : index
    %c0_22 = arith.constant 0 : index
    %32 = vector.load %arg8[%c0_21, %c0_22] : memref<2x100xf32, #tpu.memory_space<vmem>>, vector<2x100xf32>
    %cst_23 = arith.constant dense<0.000000e+00> : vector<8x100xf32>
    %33 = tpu.matmul %31, %32, %cst_23 {dimension_numbers = #tpu.dot_dimension_numbers<[1], [0], [0], [1], [0, 0, 1, 1], [], []>} : vector<8x2xf32>, vector<2x100xf32>, vector<8x100xf32> -> vector<8x100xf32>
    %c0_24 = arith.constant 0 : index
    %c0_25 = arith.constant 0 : index
    %34 = vector.load %arg9[%c0_24, %c0_25] : memref<1x100xf32, #tpu.memory_space<vmem>>, vector<1x100xf32>
    %35 = vector.broadcast %34 : vector<1x100xf32> to vector<8x100xf32>
    %36 = arith.addf %33, %35 : vector<8x100xf32>
    %cst_26 = arith.constant 0.000000e+00 : f32
    %37 = vector.broadcast %cst_26 : f32 to vector<8x100xf32>
    %38 = arith.maximumf %36, %37 : vector<8x100xf32>
    %c0_27 = arith.constant 0 : index
    %c0_28 = arith.constant 0 : index
    %39 = vector.load %arg10[%c0_27, %c0_28] : memref<2x128xf32, #tpu.memory_space<vmem>>, vector<2x128xf32>
    %cst_29 = arith.constant dense<0.000000e+00> : vector<8x128xf32>
    %40 = tpu.matmul %31, %39, %cst_29 {dimension_numbers = #tpu.dot_dimension_numbers<[1], [0], [0], [1], [0, 0, 1, 1], [], []>} : vector<8x2xf32>, vector<2x128xf32>, vector<8x128xf32> -> vector<8x128xf32>
    %c0_30 = arith.constant 0 : index
    %c0_31 = arith.constant 0 : index
    %41 = vector.load %arg11[%c0_30, %c0_31] : memref<100x128xf32, #tpu.memory_space<vmem>>, vector<100x128xf32>
    %cst_32 = arith.constant dense<0.000000e+00> : vector<8x128xf32>
    %42 = tpu.matmul %38, %41, %cst_32 {dimension_numbers = #tpu.dot_dimension_numbers<[1], [0], [0], [1], [0, 0, 1, 1], [], []>} : vector<8x100xf32>, vector<100x128xf32>, vector<8x128xf32> -> vector<8x128xf32>
    %43 = arith.addf %40, %42 : vector<8x128xf32>
    %c0_33 = arith.constant 0 : index
    %c0_34 = arith.constant 0 : index
    %44 = vector.load %arg12[%c0_33, %c0_34] : memref<1x128xf32, #tpu.memory_space<vmem>>, vector<1x128xf32>
    %45 = vector.broadcast %44 : vector<1x128xf32> to vector<8x128xf32>
    %46 = arith.addf %43, %45 : vector<8x128xf32>
    %c0_35 = arith.constant 0 : index
    %c0_36 = arith.constant 0 : index
    %47 = vector.load %arg13[%c0_35, %c0_36] : memref<8x128xf32, #tpu.memory_space<vmem>>, vector<8x128xf32>
    tpu.vector_store %arg13[%c0_35, %c0_36], %46 {strides = array<i32>} : memref<8x128xf32, #tpu.memory_space<vmem>>, vector<8x128xf32>,
    return
  }
  func.func @transform_0(%arg0: i32) -> (i32, i32) {
    %c0_i32 = arith.constant 0 : i32
    %c0_i32_0 = arith.constant 0 : i32
    %c0_i32_1 = arith.constant 0 : i32
    return %c0_i32, %c0_i32_0 : i32, i32
  }
  func.func @transform_1(%arg0: i32) -> (i32, i32) {
    %c0_i32 = arith.constant 0 : i32
    %c0_i32_0 = arith.constant 0 : i32
    %c0_i32_1 = arith.constant 0 : i32
    return %c0_i32, %c0_i32_0 : i32, i32
  }
  func.func @transform_2(%arg0: i32) -> (i32, i32) {
    %c0_i32 = arith.constant 0 : i32
    %c0_i32_0 = arith.constant 0 : i32
    %c0_i32_1 = arith.constant 0 : i32
    return %c0_i32, %c0_i32_0 : i32, i32
  }
  func.func @transform_3(%arg0: i32) -> (i32, i32) {
    %c0_i32 = arith.constant 0 : i32
    %c0_i32_0 = arith.constant 0 : i32
    %c0_i32_1 = arith.constant 0 : i32
    return %c0_i32, %c0_i32_0 : i32, i32
  }
  func.func @transform_4(%arg0: i32) -> (i32, i32) {
    %c0_i32 = arith.constant 0 : i32
    %c0_i32_0 = arith.constant 0 : i32
    %c0_i32_1 = arith.constant 0 : i32
    return %c0_i32, %c0_i32_0 : i32, i32
  }
  func.func @transform_5(%arg0: i32) -> (i32, i32) {
    %c0_i32 = arith.constant 0 : i32
    %c0_i32_0 = arith.constant 0 : i32
    %c0_i32_1 = arith.constant 0 : i32
    return %c0_i32, %c0_i32_0 : i32, i32
  }
  func.func @transform_6(%arg0: i32) -> (i32, i32) {
    %c0_i32 = arith.constant 0 : i32
    %c0_i32_0 = arith.constant 0 : i32
    %c0_i32_1 = arith.constant 0 : i32
    return %c0_i32, %c0_i32_0 : i32, i32
  }
  func.func @transform_7(%arg0: i32) -> (i32, i32) {
    %c0_i32 = arith.constant 0 : i32
    %c0_i32_0 = arith.constant 0 : i32
    %c0_i32_1 = arith.constant 0 : i32
    return %c0_i32, %c0_i32_0 : i32, i32
  }
  func.func @transform_8(%arg0: i32) -> (i32, i32) {
    %c0_i32 = arith.constant 0 : i32
    %c0_i32_0 = arith.constant 0 : i32
    %c0_i32_1 = arith.constant 0 : i32
    return %c0_i32, %c0_i32_0 : i32, i32
  }
  func.func @transform_9(%arg0: i32) -> (i32, i32) {
    %c0_i32 = arith.constant 0 : i32
    %c0_i32_0 = arith.constant 0 : i32
    %c0_i32_1 = arith.constant 0 : i32
    return %c0_i32, %c0_i32_0 : i32, i32
  }
  func.func @transform_10(%arg0: i32) -> (i32, i32) {
    %c0_i32 = arith.constant 0 : i32
    %c0_i32_0 = arith.constant 0 : i32
    %c0_i32_1 = arith.constant 0 : i32
    return %c0_i32, %c0_i32_0 : i32, i32
  }
  func.func @transform_11(%arg0: i32) -> (i32, i32) {
    %c0_i32 = arith.constant 0 : i32
    %c0_i32_0 = arith.constant 0 : i32
    %c0_i32_1 = arith.constant 0 : i32
    return %c0_i32, %c0_i32_0 : i32, i32
  }
  func.func @transform_12(%arg0: i32) -> (i32, i32) {
    %c0_i32 = arith.constant 0 : i32
    %c0_i32_0 = arith.constant 0 : i32
    %c0_i32_1 = arith.constant 0 : i32
    return %c0_i32, %c0_i32_0 : i32, i32
  }
}

</mosaic_0001>

<llo_original>
// kernel: mmmodel_forward.1
$region0: #{mmmodel_forward.1}
  #allocation0 [shape = 'u32[]', space=smem, size = 0x4, offset = 0x4, fixed_abs, tag = 'smem constant byte address 0x4 - core index']
  #allocation1 [shape = 'u32[144,128]{1,0:T(1,128)}', space=vmem, size = 0x12000, scoped, tag = 'internal scratch']
  %s0 = inlined_call_operand.vmem [shape: bf16[128,216], index: 0, kind: input, shape index: {}]
  %s1 = inlined_call_operand.vmem [shape: bf16[216,128], index: 1, kind: input, shape index: {}]
  %s2 = inlined_call_operand.vmem [shape: f32[1,128], index: 2, kind: input, shape index: {}]
  %s3 = inlined_call_operand.vmem [shape: f32[8,128], index: 3, kind: input, shape index: {}]
  %s4 = inlined_call_operand.vmem [shape: f32[128,8], index: 4, kind: input, shape index: {}]
  %s5 = inlined_call_operand.vmem [shape: f32[8,2], index: 5, kind: input, shape index: {}]
  %s6 = inlined_call_operand.vmem [shape: f32[1,2], index: 6, kind: input, shape index: {}]
  %s7 = inlined_call_operand.vmem [shape: f32[2,100], index: 7, kind: input, shape index: {}]
  %s8 = inlined_call_operand.vmem [shape: f32[1,100], index: 8, kind: input, shape index: {}]
  %s9 = inlined_call_operand.vmem [shape: f32[2,128], index: 9, kind: input, shape index: {}]
  %s10 = inlined_call_operand.vmem [shape: f32[100,128], index: 10, kind: input, shape index: {}]
  %s11 = inlined_call_operand.vmem [shape: f32[1,128], index: 11, kind: input, shape index: {}]
  %s12 = inlined_call_operand.vmem [shape: f32[8,128], index: 12, kind: output, shape index: {}]
  %s13 = sld [smem:[#allocation0]]
  $region58: #{mmmodel_forward.1} parent=0
    _
  %s15 = ssub.s32 1, %s13
  %s16 = scalar_select 0, %s15, %s13
  // Predicated region
  $region2: #{mmmodel_forward.1} parent=0 // pred_check
    _
  $region3: #{mmmodel_forward.1} parent=0 // pred_check_branch
    %18 = sbr.rel (0) target = $region5
  $region4: #{mmmodel_forward.1} parent=0 // pred_region
    _
  $region5: #{mmmodel_forward.1} parent=0 // pred_fallthru
    _
  // Predicated region
  $region6: #{mmmodel_forward.1} parent=0 // pred_check
    _
  $region7: #{mmmodel_forward.1} parent=0 // pred_check_branch
    %20 = sbr.rel (0) target = $region9
  $region8: #{mmmodel_forward.1} parent=0 // pred_region
    _
  $region9: #{mmmodel_forward.1} parent=0 // pred_fallthru
    _
  // Predicated region
  $region10: #{mmmodel_forward.1} parent=0 // pred_check
    _
  $region11: #{mmmodel_forward.1} parent=0 // pred_check_branch
    %22 = sbr.rel (0) target = $region13
  $region12: #{mmmodel_forward.1} parent=0 // pred_region
    _
  $region13: #{mmmodel_forward.1} parent=0 // pred_fallthru
    _
  // Predicated region
  $region14: #{mmmodel_forward.1} parent=0 // pred_check
    _
  $region15: #{mmmodel_forward.1} parent=0 // pred_check_branch
    %24 = sbr.rel (0) target = $region17
  $region16: #{mmmodel_forward.1} parent=0 // pred_region
    _
  $region17: #{mmmodel_forward.1} parent=0 // pred_fallthru
    _
  // Predicated region
  $region18: #{mmmodel_forward.1} parent=0 // pred_check
    _
  $region19: #{mmmodel_forward.1} parent=0 // pred_check_branch
    %26 = sbr.rel (0) target = $region21
  $region20: #{mmmodel_forward.1} parent=0 // pred_region
    _
  $region21: #{mmmodel_forward.1} parent=0 // pred_fallthru
    _
  // Predicated region
  $region22: #{mmmodel_forward.1} parent=0 // pred_check
    _
  $region23: #{mmmodel_forward.1} parent=0 // pred_check_branch
    %28 = sbr.rel (0) target = $region25
  $region24: #{mmmodel_forward.1} parent=0 // pred_region
    _
  $region25: #{mmmodel_forward.1} parent=0 // pred_fallthru
    _
  // Predicated region
  $region26: #{mmmodel_forward.1} parent=0 // pred_check
    _
  $region27: #{mmmodel_forward.1} parent=0 // pred_check_branch
    %30 = sbr.rel (0) target = $region29
  $region28: #{mmmodel_forward.1} parent=0 // pred_region
    _
  $region29: #{mmmodel_forward.1} parent=0 // pred_fallthru
    _
  // Predicated region
  $region30: #{mmmodel_forward.1} parent=0 // pred_check
    _
  $region31: #{mmmodel_forward.1} parent=0 // pred_check_branch
    %32 = sbr.rel (0) target = $region33
  $region32: #{mmmodel_forward.1} parent=0 // pred_region
    _
  $region33: #{mmmodel_forward.1} parent=0 // pred_fallthru
    _
  // Predicated region
  $region34: #{mmmodel_forward.1} parent=0 // pred_check
    _
  $region35: #{mmmodel_forward.1} parent=0 // pred_check_branch
    %34 = sbr.rel (0) target = $region37
  $region36: #{mmmodel_forward.1} parent=0 // pred_region
    _
  $region37: #{mmmodel_forward.1} parent=0 // pred_fallthru
    _
  // Predicated region
  $region38: #{mmmodel_forward.1} parent=0 // pred_check
    _
  $region39: #{mmmodel_forward.1} parent=0 // pred_check_branch
    %36 = sbr.rel (0) target = $region41
  $region40: #{mmmodel_forward.1} parent=0 // pred_region
    _
  $region41: #{mmmodel_forward.1} parent=0 // pred_fallthru
    _
  // Predicated region
  $region42: #{mmmodel_forward.1} parent=0 // pred_check
    _
  $region43: #{mmmodel_forward.1} parent=0 // pred_check_branch
    %38 = sbr.rel (0) target = $region45
  $region44: #{mmmodel_forward.1} parent=0 // pred_region
    _
  $region45: #{mmmodel_forward.1} parent=0 // pred_fallthru
    _
  // Predicated region
  $region46: #{mmmodel_forward.1} parent=0 // pred_check
    _
  $region47: #{mmmodel_forward.1} parent=0 // pred_check_branch
    %40 = sbr.rel (0) target = $region49
  $region48: #{mmmodel_forward.1} parent=0 // pred_region
    _
  $region49: #{mmmodel_forward.1} parent=0 // pred_fallthru
    _
  %v42 = vld [vmem:[%s0] sm:$0xff]
  %v43 = vld [vmem:[%s0 + $0x8] sm:$0xff]
  %v44 = vld [vmem:[%s0 + $0x10] sm:$0xff]
  %v45 = vld [vmem:[%s0 + $0x18] sm:$0xff]
  %v46 = vld [vmem:[%s0 + $0x20] sm:$0xff]
  %v47 = vld [vmem:[%s0 + $0x28] sm:$0xff]
  %v48 = vld [vmem:[%s0 + $0x30] sm:$0xff]
  %v49 = vld [vmem:[%s0 + $0x38] sm:$0xff]
  %v50 = vld [vmem:[%s0 + $0x40] sm:$0xff]
  %v51 = vld [vmem:[%s0 + $0x48] sm:$0xff]
  %v52 = vld [vmem:[%s0 + $0x50] sm:$0xff]
  %v53 = vld [vmem:[%s0 + $0x58] sm:$0xff]
  %v54 = vld [vmem:[%s0 + $0x60] sm:$0xff]
  %v55 = vld [vmem:[%s0 + $0x68] sm:$0xff]
  %v56 = vld [vmem:[%s0 + $0x70] sm:$0xff]
  %v57 = vld [vmem:[%s0 + $0x78] sm:$0xff]
  %v58 = vld [vmem:[%s1] sm:$0xf]
  %v59 = vld [vmem:[%s1 + $0x4] sm:$0xf]
  %v60 = vld [vmem:[%s1 + $0x8] sm:$0xf]
  %v61 = vld [vmem:[%s1 + $0xc] sm:$0xf]
  %v62 = vld [vmem:[%s1 + $0x10] sm:$0xf]
  %v63 = vld [vmem:[%s1 + $0x14] sm:$0xf]
  %v64 = vld [vmem:[%s1 + $0x18] sm:$0xf]
  %v65 = vld [vmem:[%s1 + $0x1c] sm:$0xf]
  %v66 = vld [vmem:[%s1 + $0x20] sm:$0xf]
  %v67 = vld [vmem:[%s1 + $0x24] sm:$0xf]
  %v68 = vld [vmem:[%s1 + $0x28] sm:$0xf]
  %v69 = vld [vmem:[%s1 + $0x2c] sm:$0xf]
  %v70 = vld [vmem:[%s1 + $0x30] sm:$0xf]
  %v71 = vld [vmem:[%s1 + $0x34] sm:$0xf]
  %v72 = vld [vmem:[%s1 + $0x38] sm:$0xf]
  %v73 = vld [vmem:[%s1 + $0x3c] sm:$0xf]
  %v74 = vld [vmem:[%s1 + $0x40] sm:$0xf]
  %v75 = vld [vmem:[%s1 + $0x44] sm:$0xf]
  %v76 = vld [vmem:[%s1 + $0x48] sm:$0xf]
  %v77 = vld [vmem:[%s1 + $0x4c] sm:$0xf]
  %v78 = vld [vmem:[%s1 + $0x50] sm:$0xf]
  %v79 = vld [vmem:[%s1 + $0x54] sm:$0xf]
  %v80 = vld [vmem:[%s1 + $0x58] sm:$0xf]
  %v81 = vld [vmem:[%s1 + $0x5c] sm:$0xf]
  %v82 = vld [vmem:[%s1 + $0x60] sm:$0xf]
  %v83 = vld [vmem:[%s1 + $0x64] sm:$0xf]
  %v84 = vld [vmem:[%s1 + $0x68] sm:$0xf]
  %v85 = vld [vmem:[%s2] sm:$0x1]
  %v87 = vlaneseq
  %v88 = vshrl.u32 %v87, 7
  %v89 = vsub.s32 0, %v88
  %v90 = vrot.slane %v85, %v89
  %v108 = vunpack.c.l.b16 %v42
  %v109 = vunpack.c.h.b16 %v42
  %v110 = vunpack.c.l.b16 %v43
  %v111 = vunpack.c.h.b16 %v43
  %v112 = vunpack.c.l.b16 %v44
  %v113 = vunpack.c.h.b16 %v44
  %v114 = vunpack.c.l.b16 %v45
  %v115 = vunpack.c.h.b16 %v45
  %v116 = vunpack.c.l.b16 %v46
  %v117 = vunpack.c.h.b16 %v46
  %v118 = vunpack.c.l.b16 %v47
  %v119 = vunpack.c.h.b16 %v47
  %v120 = vunpack.c.l.b16 %v48
  %v121 = vunpack.c.h.b16 %v48
  %v122 = vunpack.c.l.b16 %v49
  %v123 = vunpack.c.h.b16 %v49
  %v124 = vunpack.c.l.b16 %v50
  %v125 = vunpack.c.h.b16 %v50
  %v126 = vunpack.c.l.b16 %v51
  %v127 = vunpack.c.h.b16 %v51
  %v128 = vunpack.c.l.b16 %v52
  %v129 = vunpack.c.h.b16 %v52
  %v130 = vunpack.c.l.b16 %v53
  %v131 = vunpack.c.h.b16 %v53
  %v132 = vunpack.c.l.b16 %v54
  %v133 = vunpack.c.h.b16 %v54
  %v134 = vunpack.c.l.b16 %v55
  %v135 = vunpack.c.h.b16 %v55
  %v136 = vunpack.c.l.b16 %v56
  %v137 = vunpack.c.h.b16 %v56
  %v138 = vunpack.c.l.b16 %v57
  %v139 = vunpack.c.h.b16 %v57
  %v140 = vpack.c.b16 %v110, %v108
  %v141 = vpack.c.b16 %v111, %v109
  %v142 = vpack.c.b16 %v114, %v112
  %v143 = vpack.c.b16 %v115, %v113
  %v144 = vpack.c.b16 %v118, %v116
  %v145 = vpack.c.b16 %v119, %v117
  %v146 = vpack.c.b16 %v122, %v120
  %v147 = vpack.c.b16 %v123, %v121
  %v148 = vpack.c.b16 %v126, %v124
  %v149 = vpack.c.b16 %v127, %v125
  %v150 = vpack.c.b16 %v130, %v128
  %v151 = vpack.c.b16 %v131, %v129
  %v152 = vpack.c.b16 %v134, %v132
  %v153 = vpack.c.b16 %v135, %v133
  %v154 = vpack.c.b16 %v138, %v136
  %v155 = vpack.c.b16 %v139, %v137
  %v191 = vunpack.c.l.b16 %v58
  %v192 = vunpack.c.l.b16 %v59
  %v193 = vunpack.c.l.b16 %v60
  %v194 = vunpack.c.l.b16 %v61
  %v195 = vunpack.c.l.b16 %v62
  %v196 = vunpack.c.l.b16 %v63
  %v197 = vunpack.c.l.b16 %v64
  %v198 = vunpack.c.l.b16 %v65
  %v199 = vunpack.c.l.b16 %v66
  %v200 = vunpack.c.l.b16 %v67
  %v201 = vunpack.c.l.b16 %v68
  %v202 = vunpack.c.l.b16 %v69
  %v203 = vunpack.c.l.b16 %v70
  %v204 = vunpack.c.l.b16 %v71
  %v205 = vunpack.c.l.b16 %v72
  %v206 = vunpack.c.l.b16 %v73
  %v207 = vunpack.c.l.b16 %v74
  %v208 = vunpack.c.l.b16 %v75
  %v209 = vunpack.c.l.b16 %v76
  %v210 = vunpack.c.l.b16 %v77
  %v211 = vunpack.c.l.b16 %v78
  %v212 = vunpack.c.l.b16 %v79
  %v213 = vunpack.c.l.b16 %v80
  %v214 = vunpack.c.l.b16 %v81
  %v215 = vunpack.c.l.b16 %v82
  %v216 = vunpack.c.l.b16 %v83
  %v217 = vunpack.c.l.b16 %v84
  %v218 = vpack.c.b16 %v192, %v191
  %v219 = vpack.c.b16 %v194, %v193
  %v220 = vpack.c.b16 %v196, %v195
  %v221 = vpack.c.b16 %v198, %v197
  %v222 = vpack.c.b16 %v200, %v199
  %v223 = vpack.c.b16 %v202, %v201
  %v224 = vpack.c.b16 %v204, %v203
  %v225 = vpack.c.b16 %v206, %v205
  %v226 = vpack.c.b16 %v208, %v207
  %v227 = vpack.c.b16 %v210, %v209
  %v228 = vpack.c.b16 %v212, %v211
  %v229 = vpack.c.b16 %v214, %v213
  %v230 = vpack.c.b16 %v216, %v215
  %v231 = vpack.c.b16 %v217, %v217
  %vm245 = vcmask 719872
  %v247 = vsel %vm245, %v141, 0
  %v250 = vsel %vm245, %v143, 0
  %v253 = vsel %vm245, %v145, 0
  %v256 = vsel %vm245, %v147, 0
  %v259 = vsel %vm245, %v149, 0
  %v262 = vsel %vm245, %v151, 0
  %v265 = vsel %vm245, %v153, 0
  %v268 = vsel %vm245, %v155, 0
  %vm270 = vcmask 1043456
  %v272 = vsel %vm270, %v231, 0
  %274 = vmatprep.subr.bf16.mxu0 0
  %275 = vmatpush1.bf16.msra.mxu0 %v225
  %276 = vmatprep.subr.bf16.mxu0 0
  %277 = vmatpush1.bf16.msra.mxu0 %v224
  %278 = vmatprep.subr.bf16.mxu0 0
  %279 = vmatpush1.bf16.msra.mxu0 %v223
  %280 = vmatprep.subr.bf16.mxu0 0
  %281 = vmatpush1.bf16.msra.mxu0 %v222
  %282 = vmatprep.subr.bf16.mxu0 0
  %283 = vmatpush1.bf16.msra.mxu0 %v221
  %284 = vmatprep.subr.bf16.mxu0 0
  %285 = vmatpush1.bf16.msra.mxu0 %v220
  %286 = vmatprep.subr.bf16.mxu0 0
  %287 = vmatpush1.bf16.msra.mxu0 %v219
  %288 = vmatprep.subr.bf16.mxu0 0
  %289 = vmatpush1.bf16.msra.mxu0 %v218
  %290 = vmatprep.subr.bf16.mxu0 0
  %291 = vmatpush2.bf16.msra.mxu0 0
  %292 = vmatprep.subr.bf16.mxu0 0
  %293 = vmatpush2.bf16.msra.mxu0 0
  %294 = vmatprep.subr.bf16.mxu0 0
  %295 = vmatpush2.bf16.msra.mxu0 %v272
  %296 = vmatprep.subr.bf16.mxu0 0
  %297 = vmatpush2.bf16.msra.mxu0 %v230
  %298 = vmatprep.subr.bf16.mxu0 0
  %299 = vmatpush2.bf16.msra.mxu0 %v229
  %300 = vmatprep.subr.bf16.mxu0 0
  %301 = vmatpush2.bf16.msra.mxu0 %v228
  %302 = vmatprep.subr.bf16.mxu0 0
  %303 = vmatpush2.bf16.msra.mxu0 %v227
  %304 = vmatprep.subr.bf16.mxu0 0
  %305 = vmatpush2.bf16.msra.mxu0 %v226
  %306 = vmatprep.mubr.bf16.mxu0 %v247
  %307 = vmatmul.mubr.bf16.gmra.mxu0 %v140
  %v308 = vpop.f32.mrf.mxu0
  %v309 = vadd.f32 %v90, %v308
  %v310 = vpop.f32.mrf.mxu0
  %v311 = vpop.f32.mrf.mxu0
  %v312 = vadd.f32 %v90, %v311
  %v313 = vpop.f32.mrf.mxu0
  %314 = vmatprep.mubr.bf16.mxu0 %v250
  %315 = vmatmul.mubr.bf16.gmra.mxu0 %v142
  %v316 = vpop.f32.mrf.mxu0
  %v317 = vadd.f32 %v90, %v316
  %v318 = vpop.f32.mrf.mxu0
  %v319 = vpop.f32.mrf.mxu0
  %v320 = vadd.f32 %v90, %v319
  %v321 = vpop.f32.mrf.mxu0
  %322 = vmatprep.mubr.bf16.mxu0 %v253
  %323 = vmatmul.mubr.bf16.gmra.mxu0 %v144
  %v324 = vpop.f32.mrf.mxu0
  %v325 = vadd.f32 %v90, %v324
  %v326 = vpop.f32.mrf.mxu0
  %v327 = vpop.f32.mrf.mxu0
  %v328 = vadd.f32 %v90, %v327
  %v329 = vpop.f32.mrf.mxu0
  %330 = vmatprep.mubr.bf16.mxu0 %v256
  %331 = vmatmul.mubr.bf16.gmra.mxu0 %v146
  %v332 = vpop.f32.mrf.mxu0
  %v333 = vadd.f32 %v90, %v332
  %v334 = vpop.f32.mrf.mxu0
  %v335 = vpop.f32.mrf.mxu0
  %v336 = vadd.f32 %v90, %v335
  %v337 = vpop.f32.mrf.mxu0
  %338 = vmatprep.mubr.bf16.mxu0 %v259
  %339 = vmatmul.mubr.bf16.gmra.mxu0 %v148
  %v340 = vpop.f32.mrf.mxu0
  %v341 = vadd.f32 %v90, %v340
  %v342 = vpop.f32.mrf.mxu0
  %v343 = vpop.f32.mrf.mxu0
  %v344 = vadd.f32 %v90, %v343
  %v345 = vpop.f32.mrf.mxu0
  %346 = vmatprep.mubr.bf16.mxu0 %v262
  %347 = vmatmul.mubr.bf16.gmra.mxu0 %v150
  %v348 = vpop.f32.mrf.mxu0
  %v349 = vadd.f32 %v90, %v348
  %v350 = vpop.f32.mrf.mxu0
  %v351 = vpop.f32.mrf.mxu0
  %v352 = vadd.f32 %v90, %v351
  %v353 = vpop.f32.mrf.mxu0
  %354 = vmatprep.mubr.bf16.mxu0 %v265
  %355 = vmatmul.mubr.bf16.gmra.mxu0 %v152
  %v356 = vpop.f32.mrf.mxu0
  %v357 = vadd.f32 %v90, %v356
  %v358 = vpop.f32.mrf.mxu0
  %v359 = vpop.f32.mrf.mxu0
  %v360 = vadd.f32 %v90, %v359
  %v361 = vpop.f32.mrf.mxu0
  %362 = vmatprep.mubr.bf16.mxu0 %v268
  %363 = vmatmul.mubr.bf16.gmra.mxu0 %v154
  %v364 = vpop.f32.mrf.mxu0
  %v365 = vadd.f32 %v90, %v364
  %v366 = vpop.f32.mrf.mxu0
  %v367 = vpop.f32.mrf.mxu0
  %v368 = vadd.f32 %v90, %v367
  %v369 = vpop.f32.mrf.mxu0
  %370 = vdwg.mxu0
  %v371 = vmax.f32 %v309, 0.0
  %v372 = vmax.f32 %v312, 0.0
  %v373 = vmax.f32 %v317, 0.0
  %v374 = vmax.f32 %v320, 0.0
  %v375 = vmax.f32 %v325, 0.0
  %v376 = vmax.f32 %v328, 0.0
  %v377 = vmax.f32 %v333, 0.0
  %v378 = vmax.f32 %v336, 0.0
  %v379 = vmax.f32 %v341, 0.0
  %v380 = vmax.f32 %v344, 0.0
  %v381 = vmax.f32 %v349, 0.0
  %v382 = vmax.f32 %v352, 0.0
  %v383 = vmax.f32 %v357, 0.0
  %v384 = vmax.f32 %v360, 0.0
  %v385 = vmax.f32 %v365, 0.0
  %v386 = vmax.f32 %v368, 0.0
  %v387 = vld [vmem:[%s3] sm:$0xff]
  %388 = vmatprep.subr.mxu0 0.0
  %389 = vmatpush1.msra.mxu0 %v386
  %390 = vmatprep.subr.mxu0 0.0
  %391 = vmatpush1.msra.mxu0 %v385
  %392 = vmatprep.subr.mxu0 0.0
  %393 = vmatpush1.msra.mxu0 %v384
  %394 = vmatprep.subr.mxu0 0.0
  %395 = vmatpush1.msra.mxu0 %v383
  %396 = vmatprep.subr.mxu0 0.0
  %397 = vmatpush1.msra.mxu0 %v382
  %398 = vmatprep.subr.mxu0 0.0
  %399 = vmatpush1.msra.mxu0 %v381
  %400 = vmatprep.subr.mxu0 0.0
  %401 = vmatpush1.msra.mxu0 %v380
  %402 = vmatprep.subr.mxu0 0.0
  %403 = vmatpush1.msra.mxu0 %v379
  %404 = vmatprep.subr.mxu0 0.0
  %405 = vmatpush1.msra.mxu0 %v378
  %406 = vmatprep.subr.mxu0 0.0
  %407 = vmatpush1.msra.mxu0 %v377
  %408 = vmatprep.subr.mxu0 0.0
  %409 = vmatpush1.msra.mxu0 %v376
  %410 = vmatprep.subr.mxu0 0.0
  %411 = vmatpush1.msra.mxu0 %v375
  %412 = vmatprep.subr.mxu0 0.0
  %413 = vmatpush1.msra.mxu0 %v374
  %414 = vmatprep.subr.mxu0 0.0
  %415 = vmatpush1.msra.mxu0 %v373
  %416 = vmatprep.subr.mxu0 0.0
  %417 = vmatpush1.msra.mxu0 %v372
  %418 = vmatprep.subr.mxu0 0.0
  %419 = vmatpush1.msra.mxu0 %v371
  %420 = vmatprep.subr.mxu0 0.0
  %421 = vmatpush2.msra.mxu0 0.0
  %422 = vmatprep.subr.mxu0 0.0
  %423 = vmatpush2.msra.mxu0 0.0
  %424 = vmatprep.subr.mxu0 0.0
  %425 = vmatpush2.msra.mxu0 0.0
  %426 = vmatprep.subr.mxu0 0.0
  %427 = vmatpush2.msra.mxu0 0.0
  %428 = vmatprep.subr.mxu0 0.0
  %429 = vmatpush2.msra.mxu0 0.0
  %430 = vmatprep.subr.mxu0 0.0
  %431 = vmatpush2.msra.mxu0 0.0
  %432 = vmatprep.subr.mxu0 0.0
  %433 = vmatpush2.msra.mxu0 0.0
  %434 = vmatprep.subr.mxu0 0.0
  %435 = vmatpush2.msra.mxu0 0.0
  %436 = vmatprep.subr.mxu0 0.0
  %437 = vmatpush2.msra.mxu0 0.0
  %438 = vmatprep.subr.mxu0 0.0
  %439 = vmatpush2.msra.mxu0 0.0
  %440 = vmatprep.subr.mxu0 0.0
  %441 = vmatpush2.msra.mxu0 0.0
  %442 = vmatprep.subr.mxu0 0.0
  %443 = vmatpush2.msra.mxu0 0.0
  %444 = vmatprep.subr.mxu0 0.0
  %445 = vmatpush2.msra.mxu0 0.0
  %446 = vmatprep.subr.mxu0 0.0
  %447 = vmatpush2.msra.mxu0 0.0
  %448 = vmatprep.subr.mxu0 0.0
  %449 = vmatpush2.msra.mxu0 0.0
  %450 = vmatprep.subr.mxu0 0.0
  %451 = vmatpush2.msra.mxu0 0.0
  %452 = vmatprep.mubr.f32.mxu0 0.0
  %453 = vmatmul.mubr.f32.gmra.mxu0 %v387
  %v454 = vpop.f32.mrf.mxu0
  %v455 = vadd.f32 0.0, %v454
  %v456 = vpop.f32.mrf.mxu0
  %457 = vdwg.mxu0
  %v458 = vld [vmem:[%s4] sm:$0xff]
  %v459 = vld [vmem:[%s4 + $0x8] sm:$0xff]
  %v460 = vld [vmem:[%s4 + $0x10] sm:$0xff]
  %v461 = vld [vmem:[%s4 + $0x18] sm:$0xff]
  %v462 = vld [vmem:[%s4 + $0x20] sm:$0xff]
  %v463 = vld [vmem:[%s4 + $0x28] sm:$0xff]
  %v464 = vld [vmem:[%s4 + $0x30] sm:$0xff]
  %v465 = vld [vmem:[%s4 + $0x38] sm:$0xff]
  %v466 = vld [vmem:[%s4 + $0x40] sm:$0xff]
  %v467 = vld [vmem:[%s4 + $0x48] sm:$0xff]
  %v468 = vld [vmem:[%s4 + $0x50] sm:$0xff]
  %v469 = vld [vmem:[%s4 + $0x58] sm:$0xff]
  %v470 = vld [vmem:[%s4 + $0x60] sm:$0xff]
  %v471 = vld [vmem:[%s4 + $0x68] sm:$0xff]
  %v472 = vld [vmem:[%s4 + $0x70] sm:$0xff]
  %v473 = vld [vmem:[%s4 + $0x78] sm:$0xff]
  %474 = vmatprep.subr.mxu0 0.0
  %475 = vmatpush1.msra.mxu0 %v473
  %476 = vmatprep.subr.mxu0 0.0
  %477 = vmatpush1.msra.mxu0 %v472
  %478 = vmatprep.subr.mxu0 0.0
  %479 = vmatpush1.msra.mxu0 %v471
  %480 = vmatprep.subr.mxu0 0.0
  %481 = vmatpush1.msra.mxu0 %v470
  %482 = vmatprep.subr.mxu0 0.0
  %483 = vmatpush1.msra.mxu0 %v469
  %484 = vmatprep.subr.mxu0 0.0
  %485 = vmatpush1.msra.mxu0 %v468
  %486 = vmatprep.subr.mxu0 0.0
  %487 = vmatpush1.msra.mxu0 %v467
  %488 = vmatprep.subr.mxu0 0.0
  %489 = vmatpush1.msra.mxu0 %v466
  %490 = vmatprep.subr.mxu0 0.0
  %491 = vmatpush1.msra.mxu0 %v465
  %492 = vmatprep.subr.mxu0 0.0
  %493 = vmatpush1.msra.mxu0 %v464
  %494 = vmatprep.subr.mxu0 0.0
  %495 = vmatpush1.msra.mxu0 %v463
  %496 = vmatprep.subr.mxu0 0.0
  %497 = vmatpush1.msra.mxu0 %v462
  %498 = vmatprep.subr.mxu0 0.0
  %499 = vmatpush1.msra.mxu0 %v461
  %500 = vmatprep.subr.mxu0 0.0
  %501 = vmatpush1.msra.mxu0 %v460
  %502 = vmatprep.subr.mxu0 0.0
  %503 = vmatpush1.msra.mxu0 %v459
  %504 = vmatprep.subr.mxu0 0.0
  %505 = vmatpush1.msra.mxu0 %v458
  %506 = vmatprep.subr.mxu0 0.0
  %507 = vmatpush2.msra.mxu0 0.0
  %508 = vmatprep.subr.mxu0 0.0
  %509 = vmatpush2.msra.mxu0 0.0
  %510 = vmatprep.subr.mxu0 0.0
  %511 = vmatpush2.msra.mxu0 0.0
  %512 = vmatprep.subr.mxu0 0.0
  %513 = vmatpush2.msra.mxu0 0.0
  %514 = vmatprep.subr.mxu0 0.0
  %515 = vmatpush2.msra.mxu0 0.0
  %516 = vmatprep.subr.mxu0 0.0
  %517 = vmatpush2.msra.mxu0 0.0
  %518 = vmatprep.subr.mxu0 0.0
  %519 = vmatpush2.msra.mxu0 0.0
  %520 = vmatprep.subr.mxu0 0.0
  %521 = vmatpush2.msra.mxu0 0.0
  %522 = vmatprep.subr.mxu0 0.0
  %523 = vmatpush2.msra.mxu0 0.0
  %524 = vmatprep.subr.mxu0 0.0
  %525 = vmatpush2.msra.mxu0 0.0
  %526 = vmatprep.subr.mxu0 0.0
  %527 = vmatpush2.msra.mxu0 0.0
  %528 = vmatprep.subr.mxu0 0.0
  %529 = vmatpush2.msra.mxu0 0.0
  %530 = vmatprep.subr.mxu0 0.0
  %531 = vmatpush2.msra.mxu0 0.0
  %532 = vmatprep.subr.mxu0 0.0
  %533 = vmatpush2.msra.mxu0 0.0
  %534 = vmatprep.subr.mxu0 0.0
  %535 = vmatpush2.msra.mxu0 0.0
  %536 = vmatprep.subr.mxu0 0.0
  %537 = vmatpush2.msra.mxu0 0.0
  %538 = vmatprep.mubr.f32.mxu0 0.0
  %539 = vmatmul.mubr.f32.gmra.mxu0 %v455
  %v540 = vpop.f32.mrf.mxu0
  %v541 = vadd.f32 0.0, %v540
  %v542 = vpop.f32.mrf.mxu0
  %543 = vdwg.mxu0
  %v544 = vld [vmem:[%s5] sm:$0xff]
  %v545 = vld [vmem:[%s6] sm:$0x1]
  %v547 = vlaneseq
  %v548 = vshrl.u32 %v547, 7
  %v549 = vsub.s32 0, %v548
  %v550 = vrot.slane %v545, %v549
  %vm552 = vcmask 64512
  %v554 = vsel %vm552, %v541, 0
  %556 = vmatprep.subr.mxu0 0.0
  %557 = vmatpush1.msra.mxu0 0.0
  %558 = vmatprep.subr.mxu0 0.0
  %559 = vmatpush1.msra.mxu0 0.0
  %560 = vmatprep.subr.mxu0 0.0
  %561 = vmatpush1.msra.mxu0 0.0
  %562 = vmatprep.subr.mxu0 0.0
  %563 = vmatpush1.msra.mxu0 0.0
  %564 = vmatprep.subr.mxu0 0.0
  %565 = vmatpush1.msra.mxu0 0.0
  %566 = vmatprep.subr.mxu0 0.0
  %567 = vmatpush1.msra.mxu0 0.0
  %568 = vmatprep.subr.mxu0 0.0
  %569 = vmatpush1.msra.mxu0 0.0
  %570 = vmatprep.subr.mxu0 0.0
  %571 = vmatpush1.msra.mxu0 0.0
  %572 = vmatprep.subr.mxu0 0.0
  %573 = vmatpush1.msra.mxu0 0.0
  %574 = vmatprep.subr.mxu0 0.0
  %575 = vmatpush1.msra.mxu0 0.0
  %576 = vmatprep.subr.mxu0 0.0
  %577 = vmatpush1.msra.mxu0 0.0
  %578 = vmatprep.subr.mxu0 0.0
  %579 = vmatpush1.msra.mxu0 0.0
  %580 = vmatprep.subr.mxu0 0.0
  %581 = vmatpush1.msra.mxu0 0.0
  %582 = vmatprep.subr.mxu0 0.0
  %583 = vmatpush1.msra.mxu0 0.0
  %584 = vmatprep.subr.mxu0 0.0
  %585 = vmatpush1.msra.mxu0 0.0
  %586 = vmatprep.subr.mxu0 0.0
  %587 = vmatpush1.msra.mxu0 %v544
  %588 = vmatprep.subr.mxu0 0.0
  %589 = vmatpush2.msra.mxu0 0.0
  %590 = vmatprep.subr.mxu0 0.0
  %591 = vmatpush2.msra.mxu0 0.0
  %592 = vmatprep.subr.mxu0 0.0
  %593 = vmatpush2.msra.mxu0 0.0
  %594 = vmatprep.subr.mxu0 0.0
  %595 = vmatpush2.msra.mxu0 0.0
  %596 = vmatprep.subr.mxu0 0.0
  %597 = vmatpush2.msra.mxu0 0.0
  %598 = vmatprep.subr.mxu0 0.0
  %599 = vmatpush2.msra.mxu0 0.0
  %600 = vmatprep.subr.mxu0 0.0
  %601 = vmatpush2.msra.mxu0 0.0
  %602 = vmatprep.subr.mxu0 0.0
  %603 = vmatpush2.msra.mxu0 0.0
  %604 = vmatprep.subr.mxu0 0.0
  %605 = vmatpush2.msra.mxu0 0.0
  %606 = vmatprep.subr.mxu0 0.0
  %607 = vmatpush2.msra.mxu0 0.0
  %608 = vmatprep.subr.mxu0 0.0
  %609 = vmatpush2.msra.mxu0 0.0
  %610 = vmatprep.subr.mxu0 0.0
  %611 = vmatpush2.msra.mxu0 0.0
  %612 = vmatprep.subr.mxu0 0.0
  %613 = vmatpush2.msra.mxu0 0.0
  %614 = vmatprep.subr.mxu0 0.0
  %615 = vmatpush2.msra.mxu0 0.0
  %616 = vmatprep.subr.mxu0 0.0
  %617 = vmatpush2.msra.mxu0 0.0
  %618 = vmatprep.subr.mxu0 0.0
  %619 = vmatpush2.msra.mxu0 0.0
  %620 = vmatprep.mubr.f32.mxu0 0.0
  %621 = vmatmul.mubr.f32.gmra.mxu0 %v554
  %v622 = vpop.f32.mrf.mxu0
  %v623 = vadd.f32 %v550, %v622
  %v624 = vpop.f32.mrf.mxu0
  %625 = vdwg.mxu0
  %vm626 = vcmask 15360
  %v627 = vsel %vm626, %v623, inf
  %v628 = vrot.slane %v627, 4
  %v629 = vmin.f32 %v627, %v628
  %v630 = vrot.slane %v629, 2
  %v631 = vmin.f32 %v629, %v630
  %v632 = vrot.slane %v631, 1
  %v633 = vmin.f32 %v631, %v632
  %v634 = vsel %vm626, %v623, -inf
  %v635 = vrot.slane %v634, 4
  %v636 = vmax.f32 %v634, %v635
  %v637 = vrot.slane %v636, 2
  %v638 = vmax.f32 %v636, %v637
  %v639 = vrot.slane %v638, 1
  %v640 = vmax.f32 %v638, %v639
  %v641 = vsub.f32 %v640, %v633
  %vm642 = vcmp.gt.f32.partialorder %v641, 0.0
  %v643 = vsub.f32 %v623, %v633
  %v644 = vrcp.pop %v641
  %v645 = vmul.f32 %v643, %v644
  %v646 = vsel %vm642, 1, 0
  %vm647 = vcmp.eq.s32.totalorder %v646, 1
  %v648 = vsel %vm647, %v645, 0.0
  %v649 = vld [vmem:[%s7] sm:$0x3]
  %v650 = vld [vmem:[%s8] sm:$0x1]
  %v652 = vlaneseq
  %v653 = vshrl.u32 %v652, 7
  %v654 = vsub.s32 0, %v653
  %v655 = vrot.slane %v650, %v654
  %v658 = vsel %vm626, %v648, 0
  %vm660 = vcmask 1041408
  %v662 = vsel %vm660, %v649, 0
  %664 = vmatprep.subr.mxu0 0.0
  %665 = vmatpush1.msra.mxu0 0.0
  %666 = vmatprep.subr.mxu0 0.0
  %667 = vmatpush1.msra.mxu0 0.0
  %668 = vmatprep.subr.mxu0 0.0
  %669 = vmatpush1.msra.mxu0 0.0
  %670 = vmatprep.subr.mxu0 0.0
  %671 = vmatpush1.msra.mxu0 0.0
  %672 = vmatprep.subr.mxu0 0.0
  %673 = vmatpush1.msra.mxu0 0.0
  %674 = vmatprep.subr.mxu0 0.0
  %675 = vmatpush1.msra.mxu0 0.0
  %676 = vmatprep.subr.mxu0 0.0
  %677 = vmatpush1.msra.mxu0 0.0
  %678 = vmatprep.subr.mxu0 0.0
  %679 = vmatpush1.msra.mxu0 0.0
  %680 = vmatprep.subr.mxu0 0.0
  %681 = vmatpush1.msra.mxu0 0.0
  %682 = vmatprep.subr.mxu0 0.0
  %683 = vmatpush1.msra.mxu0 0.0
  %684 = vmatprep.subr.mxu0 0.0
  %685 = vmatpush1.msra.mxu0 0.0
  %686 = vmatprep.subr.mxu0 0.0
  %687 = vmatpush1.msra.mxu0 0.0
  %688 = vmatprep.subr.mxu0 0.0
  %689 = vmatpush1.msra.mxu0 0.0
  %690 = vmatprep.subr.mxu0 0.0
  %691 = vmatpush1.msra.mxu0 0.0
  %692 = vmatprep.subr.mxu0 0.0
  %693 = vmatpush1.msra.mxu0 0.0
  %694 = vmatprep.subr.mxu0 0.0
  %695 = vmatpush1.msra.mxu0 %v662
  %696 = vmatprep.subr.mxu0 0.0
  %697 = vmatpush2.msra.mxu0 0.0
  %698 = vmatprep.subr.mxu0 0.0
  %699 = vmatpush2.msra.mxu0 0.0
  %700 = vmatprep.subr.mxu0 0.0
  %701 = vmatpush2.msra.mxu0 0.0
  %702 = vmatprep.subr.mxu0 0.0
  %703 = vmatpush2.msra.mxu0 0.0
  %704 = vmatprep.subr.mxu0 0.0
  %705 = vmatpush2.msra.mxu0 0.0
  %706 = vmatprep.subr.mxu0 0.0
  %707 = vmatpush2.msra.mxu0 0.0
  %708 = vmatprep.subr.mxu0 0.0
  %709 = vmatpush2.msra.mxu0 0.0
  %710 = vmatprep.subr.mxu0 0.0
  %711 = vmatpush2.msra.mxu0 0.0
  %712 = vmatprep.subr.mxu0 0.0
  %713 = vmatpush2.msra.mxu0 0.0
  %714 = vmatprep.subr.mxu0 0.0
  %715 = vmatpush2.msra.mxu0 0.0
  %716 = vmatprep.subr.mxu0 0.0
  %717 = vmatpush2.msra.mxu0 0.0
  %718 = vmatprep.subr.mxu0 0.0
  %719 = vmatpush2.msra.mxu0 0.0
  %720 = vmatprep.subr.mxu0 0.0
  %721 = vmatpush2.msra.mxu0 0.0
  %722 = vmatprep.subr.mxu0 0.0
  %723 = vmatpush2.msra.mxu0 0.0
  %724 = vmatprep.subr.mxu0 0.0
  %725 = vmatpush2.msra.mxu0 0.0
  %726 = vmatprep.subr.mxu0 0.0
  %727 = vmatpush2.msra.mxu0 0.0
  %728 = vmatprep.mubr.f32.mxu0 0.0
  %729 = vmatmul.mubr.f32.gmra.mxu0 %v658
  %v730 = vpop.f32.mrf.mxu0
  %v731 = vadd.f32 %v655, %v730
  %v732 = vpop.f32.mrf.mxu0
  %733 = vdwg.mxu0
  %v734 = vmax.f32 %v731, 0.0
  %v735 = vld [vmem:[%s9] sm:$0x3]
  %v736 = vld [vmem:[%s10] sm:$0xff]
  %v737 = vld [vmem:[%s10 + $0x8] sm:$0xff]
  %v738 = vld [vmem:[%s10 + $0x10] sm:$0xff]
  %v739 = vld [vmem:[%s10 + $0x18] sm:$0xff]
  %v740 = vld [vmem:[%s10 + $0x20] sm:$0xff]
  %v741 = vld [vmem:[%s10 + $0x28] sm:$0xff]
  %v742 = vld [vmem:[%s10 + $0x30] sm:$0xff]
  %v743 = vld [vmem:[%s10 + $0x38] sm:$0xff]
  %v744 = vld [vmem:[%s10 + $0x40] sm:$0xff]
  %v745 = vld [vmem:[%s10 + $0x48] sm:$0xff]
  %v746 = vld [vmem:[%s10 + $0x50] sm:$0xff]
  %v747 = vld [vmem:[%s10 + $0x58] sm:$0xff]
  %v748 = vld [vmem:[%s10 + $0x60] sm:$0xf]
  %vm749 = vcmask 818176
  %v751 = vsel %vm749, %v734, 0
  %v754 = vsel %vm270, %v748, 0
  %756 = vmatprep.subr.mxu0 0.0
  %757 = vmatpush1.msra.mxu0 0.0
  %758 = vmatprep.subr.mxu0 0.0
  %759 = vmatpush1.msra.mxu0 0.0
  %760 = vmatprep.subr.mxu0 0.0
  %761 = vmatpush1.msra.mxu0 0.0
  %762 = vmatprep.subr.mxu0 0.0
  %763 = vmatpush1.msra.mxu0 %v754
  %764 = vmatprep.subr.mxu0 0.0
  %765 = vmatpush1.msra.mxu0 %v747
  %766 = vmatprep.subr.mxu0 0.0
  %767 = vmatpush1.msra.mxu0 %v746
  %768 = vmatprep.subr.mxu0 0.0
  %769 = vmatpush1.msra.mxu0 %v745
  %770 = vmatprep.subr.mxu0 0.0
  %771 = vmatpush1.msra.mxu0 %v744
  %772 = vmatprep.subr.mxu0 0.0
  %773 = vmatpush1.msra.mxu0 %v743
  %774 = vmatprep.subr.mxu0 0.0
  %775 = vmatpush1.msra.mxu0 %v742
  %776 = vmatprep.subr.mxu0 0.0
  %777 = vmatpush1.msra.mxu0 %v741
  %778 = vmatprep.subr.mxu0 0.0
  %779 = vmatpush1.msra.mxu0 %v740
  %780 = vmatprep.subr.mxu0 0.0
  %781 = vmatpush1.msra.mxu0 %v739
  %782 = vmatprep.subr.mxu0 0.0
  %783 = vmatpush1.msra.mxu0 %v738
  %784 = vmatprep.subr.mxu0 0.0
  %785 = vmatpush1.msra.mxu0 %v737
  %786 = vmatprep.subr.mxu0 0.0
  %787 = vmatpush1.msra.mxu0 %v736
  %788 = vmatprep.subr.mxu0 0.0
  %789 = vmatpush2.msra.mxu0 0.0
  %790 = vmatprep.subr.mxu0 0.0
  %791 = vmatpush2.msra.mxu0 0.0
  %792 = vmatprep.subr.mxu0 0.0
  %793 = vmatpush2.msra.mxu0 0.0
  %794 = vmatprep.subr.mxu0 0.0
  %795 = vmatpush2.msra.mxu0 0.0
  %796 = vmatprep.subr.mxu0 0.0
  %797 = vmatpush2.msra.mxu0 0.0
  %798 = vmatprep.subr.mxu0 0.0
  %799 = vmatpush2.msra.mxu0 0.0
  %800 = vmatprep.subr.mxu0 0.0
  %801 = vmatpush2.msra.mxu0 0.0
  %802 = vmatprep.subr.mxu0 0.0
  %803 = vmatpush2.msra.mxu0 0.0
  %804 = vmatprep.subr.mxu0 0.0
  %805 = vmatpush2.msra.mxu0 0.0
  %806 = vmatprep.subr.mxu0 0.0
  %807 = vmatpush2.msra.mxu0 0.0
  %808 = vmatprep.subr.mxu0 0.0
  %809 = vmatpush2.msra.mxu0 0.0
  %810 = vmatprep.subr.mxu0 0.0
  %811 = vmatpush2.msra.mxu0 0.0
  %812 = vmatprep.subr.mxu0 0.0
  %813 = vmatpush2.msra.mxu0 0.0
  %814 = vmatprep.subr.mxu0 0.0
  %815 = vmatpush2.msra.mxu0 0.0
  %816 = vmatprep.subr.mxu0 0.0
  %817 = vmatpush2.msra.mxu0 0.0
  %818 = vmatprep.subr.mxu0 0.0
  %819 = vmatpush2.msra.mxu0 0.0
  %820 = vmatprep.mubr.f32.mxu0 0.0
  %821 = vmatmul.mubr.f32.gmra.mxu0 %v751
  %v822 = vpop.f32.mrf.mxu0
  %v823 = vadd.f32 0.0, %v822
  %v824 = vpop.f32.mrf.mxu0
  %825 = vdwg.mxu0
  %v827 = vsel %vm660, %v735, 0
  %829 = vmatprep.subr.mxu0 0.0
  %830 = vmatpush1.msra.mxu0 0.0
  %831 = vmatprep.subr.mxu0 0.0
  %832 = vmatpush1.msra.mxu0 0.0
  %833 = vmatprep.subr.mxu0 0.0
  %834 = vmatpush1.msra.mxu0 0.0
  %835 = vmatprep.subr.mxu0 0.0
  %836 = vmatpush1.msra.mxu0 0.0
  %837 = vmatprep.subr.mxu0 0.0
  %838 = vmatpush1.msra.mxu0 0.0
  %839 = vmatprep.subr.mxu0 0.0
  %840 = vmatpush1.msra.mxu0 0.0
  %841 = vmatprep.subr.mxu0 0.0
  %842 = vmatpush1.msra.mxu0 0.0
  %843 = vmatprep.subr.mxu0 0.0
  %844 = vmatpush1.msra.mxu0 0.0
  %845 = vmatprep.subr.mxu0 0.0
  %846 = vmatpush1.msra.mxu0 0.0
  %847 = vmatprep.subr.mxu0 0.0
  %848 = vmatpush1.msra.mxu0 0.0
  %849 = vmatprep.subr.mxu0 0.0
  %850 = vmatpush1.msra.mxu0 0.0
  %851 = vmatprep.subr.mxu0 0.0
  %852 = vmatpush1.msra.mxu0 0.0
  %853 = vmatprep.subr.mxu0 0.0
  %854 = vmatpush1.msra.mxu0 0.0
  %855 = vmatprep.subr.mxu0 0.0
  %856 = vmatpush1.msra.mxu0 0.0
  %857 = vmatprep.subr.mxu0 0.0
  %858 = vmatpush1.msra.mxu0 0.0
  %859 = vmatprep.subr.mxu0 0.0
  %860 = vmatpush1.msra.mxu0 %v827
  %861 = vmatprep.subr.mxu0 0.0
  %862 = vmatpush2.msra.mxu0 0.0
  %863 = vmatprep.subr.mxu0 0.0
  %864 = vmatpush2.msra.mxu0 0.0
  %865 = vmatprep.subr.mxu0 0.0
  %866 = vmatpush2.msra.mxu0 0.0
  %867 = vmatprep.subr.mxu0 0.0
  %868 = vmatpush2.msra.mxu0 0.0
  %869 = vmatprep.subr.mxu0 0.0
  %870 = vmatpush2.msra.mxu0 0.0
  %871 = vmatprep.subr.mxu0 0.0
  %872 = vmatpush2.msra.mxu0 0.0
  %873 = vmatprep.subr.mxu0 0.0
  %874 = vmatpush2.msra.mxu0 0.0
  %875 = vmatprep.subr.mxu0 0.0
  %876 = vmatpush2.msra.mxu0 0.0
  %877 = vmatprep.subr.mxu0 0.0
  %878 = vmatpush2.msra.mxu0 0.0
  %879 = vmatprep.subr.mxu0 0.0
  %880 = vmatpush2.msra.mxu0 0.0
  %881 = vmatprep.subr.mxu0 0.0
  %882 = vmatpush2.msra.mxu0 0.0
  %883 = vmatprep.subr.mxu0 0.0
  %884 = vmatpush2.msra.mxu0 0.0
  %885 = vmatprep.subr.mxu0 0.0
  %886 = vmatpush2.msra.mxu0 0.0
  %887 = vmatprep.subr.mxu0 0.0
  %888 = vmatpush2.msra.mxu0 0.0
  %889 = vmatprep.subr.mxu0 0.0
  %890 = vmatpush2.msra.mxu0 0.0
  %891 = vmatprep.subr.mxu0 0.0
  %892 = vmatpush2.msra.mxu0 0.0
  %893 = vmatprep.mubr.f32.mxu0 0.0
  %894 = vmatmul.mubr.f32.gmra.mxu0 %v658
  %v895 = vpop.f32.mrf.mxu0
  %v896 = vadd.f32 %v823, %v895
  %v897 = vpop.f32.mrf.mxu0
  %898 = vdwg.mxu0
  %v899 = vld [vmem:[%s11] sm:$0x1]
  %v901 = vlaneseq
  %v902 = vshrl.u32 %v901, 7
  %v903 = vsub.s32 0, %v902
  %v904 = vrot.slane %v899, %v903
  %v906 = vadd.f32 %v896, %v904
  %907 = vst [vmem:[%s12] sm:$0xff] %v906
  // Predicated region
  $region50: #{mmmodel_forward.1} parent=0 // pred_check
    _
  $region51: #{mmmodel_forward.1} parent=0 // pred_check_branch
    %909 = sbr.rel (0) target = $region53
  $region52: #{mmmodel_forward.1} parent=0 // pred_region
    _
  $region53: #{mmmodel_forward.1} parent=0 // pred_fallthru
    _
  // Predicated region
  $region54: #{mmmodel_forward.1} parent=0 // pred_check
    _
  $region55: #{mmmodel_forward.1} parent=0 // pred_check_branch
    %911 = sbr.rel (0) target = $region57
  $region56: #{mmmodel_forward.1} parent=0 // pred_region
    _
  $region57: #{mmmodel_forward.1} parent=0 // pred_fallthru
    _

</llo_original>
